<compile_context>
chip_gen: v6e
topology: v6e:2x2x1
jax: 0.10.0
libtpu: 0.0.40
codegen_flags: <defaults>
</compile_context>

<pallas_src>
import jax
import jax.numpy as jnp
import numpy as np
from jax.experimental import pallas as pl
from jax.experimental.pallas import tpu as pltpu


# --------------------------------- small helpers --------------------------------- #
def _round_up(v, m):
    return (v + m - 1) // m * m


def _vmem_limits():
    """(vmem_limit_bytes, block_budget_bytes) derived from physical VMEM per core."""
    phys = 64 * 1024 * 1024                      # conservative fallback (v7x-sized)
    try:
        info = pltpu.get_tpu_info()
        phys = int(getattr(info, "vmem_capacity_bytes", phys))
    except Exception:
        pass
    # v5e/v6e (128 MiB) -> 112 MiB scoped limit; v7x (64 MiB) -> 48 MiB.
    limit = max(32 * 1024 * 1024, min(phys - 16 * 1024 * 1024, 112 * 1024 * 1024))
    budget = limit - 8 * 1024 * 1024             # headroom for compiler scratch
    return limit, budget


def _num_tensorcores():
    """Best-effort TensorCore count of the local device (1 on v5e/v6e, 2 on v7x)."""
    dev = jax.devices()[0]
    n = getattr(dev, "num_cores", None)
    if n is None:
        n = getattr(dev, "core_count", 1)
    try:
        return max(1, int(n))
    except Exception:
        return 1


def _pick_batch_tile(batch, per_batch_bytes, budget_bytes, prefer_two_steps):
    """Largest divisor of `batch` fitting the VMEM budget; prefer BT % 8 == 0 so
    the fused (2*BT, C) MLP path is sublane-aligned; only keep >= 2 grid steps
    when the chip actually has >= 2 TensorCores (v7x)."""
    divisors = [d for d in range(1, batch + 1) if batch % d == 0]
    fits = [d for d in divisors if d * per_batch_bytes <= budget_bytes]
    if not fits:
        # TODO(synk): HW-tiled two-pass reduction (running sum/max with pl.when
        # init/finalize, then a scaling pass) when even one batch element's
        # (C, H*W) slab exceeds the VMEM budget (production shapes on v7x).
        return 1

    def best(cands):
        aligned = [d for d in cands if d % 8 == 0]
        return max(aligned) if aligned else max(cands)

    bt = best(fits)
    if prefer_two_steps and batch > 1:
        two = [d for d in fits if batch // d >= 2]
        if two:
            bt = best(two)
    return bt


def _conv_as_matrices(conv_w, H, W):
    """Fold the Conv2d(2, 1, k=7, pad=3) + zero-padding into two dense (HW, HW)
    matrices so the in-kernel conv is just two matmuls on the pooled maps.
    Ka[p, q] = conv_w[0, i_p-i_q+3, j_p-j_q+3] when the offset is within the 7x7
    window, else 0 (which exactly encodes padding=3)."""
    HW = H * W
    idx = jnp.arange(HW, dtype=jnp.int32)
    ip, jp = idx // W, idx % W
    dh = ip[:, None] - ip[None, :] + 3          # rows = p (input), cols = q (output)
    dw = jp[:, None] - jp[None, :] + 3
    valid = (dh >= 0) & (dh < 7) & (dw >= 0) & (dw < 7)
    dh_c = jnp.clip(dh, 0, 6)
    dw_c = jnp.clip(dw, 0, 6)
    ka = jnp.where(valid, conv_w[0][dh_c, dw_c], 0.0).astype(jnp.float32)
    km = jnp.where(valid, conv_w[1][dh_c, dw_c], 0.0).astype(jnp.float32)
    return ka, km


# ------------------------------- fused CBAM kernel ------------------------------- #
def _cbam_kernel(x_ref, w1_ref, w2_ref, ka_ref, km_ref, b_ref, out_ref, sw_ref):
    # x_ref: (BT, C, HW) f32, lane-dense (HW on lanes).
    # w1_ref: (C, Cr), w2_ref: (Cr, C)  (pre-transposed: y = v @ W)
    # ka_ref/km_ref: (HW, HW) dense conv operators for the avg / max pooled maps.
    # b_ref: SMEM (1,) conv bias.
    x = x_ref[...]
    bt, c, hw = x.shape

    # ---- channel attention: global avg / max pool over the lane (H*W) axis ----
    avg = jnp.sum(x, axis=-1) * (1.0 / hw)                 # (BT, C)
    mx = jnp.max(x, axis=-1)                               # (BT, C)

    w1 = w1_ref[...]
    w2 = w2_ref[...]

    def mlp(v):                                            # (M, C) -> (M, C)
        h = jnp.maximum(jnp.dot(v, w1, preferred_element_type=jnp.float32), 0.0)
        return jax.nn.sigmoid(jnp.dot(h, w2, preferred_element_type=jnp.float32))

    if bt % 8 == 0:
        # Sublane-aligned stack of avg & max rows -> a single dot->relu->dot->sigmoid
        # chain (fills MXU rows, halves EUP sigmoid calls).
        s = mlp(jnp.concatenate([avg, mx], axis=0))        # (2*BT, C)
        scale_c = s[:bt] + s[bt:]                          # (BT, C)
    else:
        scale_c = mlp(avg) + mlp(mx)                       # (BT, C)

    x_ca = x * scale_c[:, :, None]                         # (BT, C, HW)

    # ---- spatial attention, fused (no HBM round-trip of x_ca) ----
    cavg = jnp.sum(x_ca, axis=1) * (1.0 / c)               # (BT, HW) channel mean
    cmax = jnp.max(x_ca, axis=1)                           # (BT, HW) channel max
    conv = (jnp.dot(cavg, ka_ref[...], preferred_element_type=jnp.float32)
            + jnp.dot(cmax, km_ref[...], preferred_element_type=jnp.float32)
            + b_ref[0])
    scale_s = jax.nn.sigmoid(conv)                         # (BT, HW)

    out_ref[...] = x_ca * scale_s[:, None, :]              # (BT, C, HW), lane-dense store
    sw_ref[...] = scale_s[:, None, :]                      # (BT, 1, HW)


# ------------------------------------ wrapper ------------------------------------ #
def cbam_forward(x_nchw, w1_t, w2_t, conv_w, conv_b):
    """CBAM forward.

    x_nchw: (B, C, H, W) f32
    w1_t:   (C, Cr) f32    first Linear weight, pre-transposed (y = v @ w1_t)
    w2_t:   (Cr, C) f32    second Linear weight, pre-transposed
    conv_w: (2, 7, 7) f32  SpatialAttention Conv2d(2, 1, 7, padding=3) weight (out-chan squeezed)
    conv_b: (1,) f32       conv bias
    Returns (out (B, C, H, W), spatial_weights (B, 1, H, W)).
    """
    B, C, H, W = x_nchw.shape
    HW = H * W
    Cr = w1_t.shape[1]

    vmem_limit, block_budget = _vmem_limits()
    prefer_two_steps = _num_tensorcores() >= 2

    # VMEM accounting with lane/sublane padding of the tiled dims.
    hwp = _round_up(HW, 128)
    cp = _round_up(C, 8)
    big = 4 * cp * hwp                                    # one f32 (1, C, HW) slab
    # 2 pipelined input buffers + 2 pipelined output buffers + ~1 slab of live
    # in-kernel values, plus the (tiny) double-buffered sw block.
    per_batch_bytes = 5 * big + 2 * 4 * 8 * hwp
    # BT-independent VMEM: conv matrices (2 specs x 2 buffers) + MLP weights.
    fixed_bytes = (2 * 2 * 4 * _round_up(HW, 8) * hwp
                   + 2 * 2 * 4 * cp * _round_up(max(Cr, 1), 128))
    BT = _pick_batch_tile(B, per_batch_bytes,
                          max(block_budget - fixed_bytes, per_batch_bytes),
                          prefer_two_steps)

    # TODO(synk): for production ResNet-50 spatial sizes (e.g. C=256, HW=56*56),
    # a full (C, HW) slab per batch element no longer fits VMEM (notably v7x's
    # 64 MiB/TC): split the HW axis into a two-pass running sum/max reduction +
    # scaling pass, and replace the dense (HW, HW) conv matrices with a
    # pltpu.roll-based masked-tap sweep over the pooled maps.

    # Fold conv + padding into two small dense operators (exact, built in f32).
    ka, km = _conv_as_matrices(conv_w, H, W)
    b_arr = conv_b.reshape(1)

    # Lane-dense layout for the dominant tensor: flatten H*W onto the lane axis.
    x_flat = x_nchw.reshape(B, C, HW)

    compiler_params = pltpu.CompilerParams(
        # NOTE(v7x): if profiling shows one idle TensorCore, switch this axis to
        # pltpu.CORE_PARALLEL (2 TCs share the chip); on v5e/v6e it is a no-op.
        dimension_semantics=("parallel",),
        vmem_limit_bytes=vmem_limit,
    )

    out_flat, sw_flat = pl.pallas_call(
        _cbam_kernel,
        out_shape=(
            jax.ShapeDtypeStruct((B, C, HW), jnp.float32),
            jax.ShapeDtypeStruct((B, 1, HW), jnp.float32),
        ),
        grid_spec=pltpu.PrefetchScalarGridSpec(
            num_scalar_prefetch=0,
            grid=(B // BT,),
            in_specs=[
                pl.BlockSpec((BT, C, HW), lambda b: (b, 0, 0)),
                pl.BlockSpec((C, Cr), lambda b: (0, 0)),
                pl.BlockSpec((Cr, C), lambda b: (0, 0)),
                pl.BlockSpec((HW, HW), lambda b: (0, 0)),   # constant block -> DMA'd once
                pl.BlockSpec((HW, HW), lambda b: (0, 0)),
                pl.BlockSpec(memory_space=pltpu.MemorySpace.SMEM),
            ],
            out_specs=(
                pl.BlockSpec((BT, C, HW), lambda b: (b, 0, 0)),
                pl.BlockSpec((BT, 1, HW), lambda b: (b, 0, 0)),
            ),
        ),
        compiler_params=compiler_params,
    )(x_flat, w1_t, w2_t, ka, km, b_arr)

    # Contiguous reshapes back to NCHW (free).
    return out_flat.reshape(B, C, H, W), sw_flat.reshape(B, 1, H, W)


# ------------------------------------ reference ----------------------------------- #
def reference_cbam(x, w1_t, w2_t, conv_w, conv_b):
    hi = jax.lax.Precision.HIGHEST
    avg = jnp.mean(x, axis=(2, 3))                   # (B, C)
    mx = jnp.max(x, axis=(2, 3))                     # (B, C)

    def mlp(v):
        h = jnp.maximum(jnp.dot(v, w1_t, precision=hi), 0.0)
        return jax.nn.sigmoid(jnp.dot(h, w2_t, precision=hi))

    scale_c = mlp(avg) + mlp(mx)                     # (B, C)
    x_ca = x * scale_c[:, :, None, None]

    cat = jnp.concatenate(
        [jnp.mean(x_ca, axis=1, keepdims=True), jnp.max(x_ca, axis=1, keepdims=True)],
        axis=1)                                      # (B, 2, H, W)
    conv = jax.lax.conv_general_dilated(
        cat, conv_w.reshape(1, 2, 7, 7), window_strides=(1, 1),
        padding=((3, 3), (3, 3)),
        dimension_numbers=("NCHW", "OIHW", "NCHW"), precision=hi)
    scale_s = jax.nn.sigmoid(conv + conv_b[0])       # (B, 1, H, W)
    return x_ca * scale_s, scale_s


if __name__ == "__main__":
    # Small shapes consistent with the module: B=2, C=32, H=W=16, reduction=4.
    B, C, H, W = 2, 32, 16, 16
    reduction = 4
    Cr = C // reduction

    key = jax.random.PRNGKey(0)
    kx, k1, k2, k3, k4 = jax.random.split(key, 5)

    x = jax.random.normal(kx, (B, C, H, W), dtype=jnp.float32)
    # Linear(C, Cr, bias=False) / Linear(Cr, C, bias=False), stored pre-transposed.
    w1_t = jax.random.normal(k1, (C, Cr), dtype=jnp.float32) / np.sqrt(C)
    w2_t = jax.random.normal(k2, (Cr, C), dtype=jnp.float32) / np.sqrt(Cr)
    # Conv2d(2, 1, kernel_size=7, padding=3) weight (out-chan squeezed) and bias.
    conv_w = jax.random.normal(k3, (2, 7, 7), dtype=jnp.float32) / np.sqrt(2 * 49)
    conv_b = jax.random.normal(k4, (1,), dtype=jnp.float32) * 0.1

    cbam_jit = jax.jit(cbam_forward)
    out, sw = cbam_jit(x, w1_t, w2_t, conv_w, conv_b)
    out = jax.block_until_ready(out)
    sw = jax.block_until_ready(sw)

    ref_out, ref_sw = reference_cbam(x, w1_t, w2_t, conv_w, conv_b)
    ref_out = jax.block_until_ready(ref_out)
    ref_sw = jax.block_until_ready(ref_sw)

    np.testing.assert_allclose(np.asarray(out), np.asarray(ref_out), rtol=1e-4, atol=1e-5)
    np.testing.assert_allclose(np.asarray(sw), np.asarray(ref_sw), rtol=1e-4, atol=1e-5)

    print("KERNEL_OK")
</pallas_src>

<mosaic_0001>
module attributes {stable_mosaic.version = 11 : i64} {
  func.func @_cbam_kernel(%arg0: i32, %arg1: memref<2x32x256xf32, #tpu.memory_space<vmem>>, %arg2: memref<32x8xf32, #tpu.memory_space<vmem>>, %arg3: memref<8x32xf32, #tpu.memory_space<vmem>>, %arg4: memref<256x256xf32, #tpu.memory_space<vmem>>, %arg5: memref<256x256xf32, #tpu.memory_space<vmem>>, %arg6: memref<1xf32, #tpu.memory_space<smem>>, %arg7: memref<2x32x256xf32, #tpu.memory_space<vmem>>, %arg8: memref<2x1x256xf32, #tpu.memory_space<vmem>>) attributes {dimension_semantics = [#tpu.dimension_semantics<parallel>], iteration_bounds = array<i64: 1>, scalar_prefetch = 0 : i64, scratch_operands = 0 : i64, tpu.core_type = #tpu.core_type<tc>, window_params = [{transform_indices = @transform_0, window_bounds = array<i64: 2, 32, 256>}, {pipeline_mode = #tpu.pipeline_mode<synchronous>, transform_indices = @transform_1, window_bounds = array<i64: 32, 8>}, {pipeline_mode = #tpu.pipeline_mode<synchronous>, transform_indices = @transform_2, window_bounds = array<i64: 8, 32>}, {pipeline_mode = #tpu.pipeline_mode<synchronous>, transform_indices = @transform_3, window_bounds = array<i64: 256, 256>}, {pipeline_mode = #tpu.pipeline_mode<synchronous>, transform_indices = @transform_4, window_bounds = array<i64: 256, 256>}, {transform_indices = @transform_5, window_bounds = array<i64: 1>}, {transform_indices = @transform_6, window_bounds = array<i64: 2, 32, 256>}, {transform_indices = @transform_7, window_bounds = array<i64: 2, 1, 256>}]} {
    %c0 = arith.constant 0 : index
    %c0_0 = arith.constant 0 : index
    %c0_1 = arith.constant 0 : index
    %0 = vector.load %arg1[%c0, %c0_0, %c0_1] : memref<2x32x256xf32, #tpu.memory_space<vmem>>, vector<2x32x256xf32>
    %cst = arith.constant dense<0.000000e+00> : vector<2x32xf32>
    %1 = vector.multi_reduction <add>, %0, %cst [2] : vector<2x32x256xf32> to vector<2x32xf32>
    %cst_2 = arith.constant 3.906250e-03 : f32
    %2 = vector.broadcast %cst_2 : f32 to vector<2x32xf32>
    %3 = arith.mulf %1, %2 : vector<2x32xf32>
    %cst_3 = arith.constant dense<0xFF800000> : vector<2x32xf32>
    %4 = vector.multi_reduction <maximumf>, %0, %cst_3 [2] : vector<2x32x256xf32> to vector<2x32xf32>
    %c0_4 = arith.constant 0 : index
    %c0_5 = arith.constant 0 : index
    %5 = vector.load %arg2[%c0_4, %c0_5] : memref<32x8xf32, #tpu.memory_space<vmem>>, vector<32x8xf32>
    %c0_6 = arith.constant 0 : index
    %c0_7 = arith.constant 0 : index
    %6 = vector.load %arg3[%c0_6, %c0_7] : memref<8x32xf32, #tpu.memory_space<vmem>>, vector<8x32xf32>
    %cst_8 = arith.constant dense<0.000000e+00> : vector<2x8xf32>
    %7 = tpu.matmul %3, %5, %cst_8 {dimension_numbers = #tpu.dot_dimension_numbers<[1], [0], [0], [1], [0, 0, 1, 1], [], []>} : vector<2x32xf32>, vector<32x8xf32>, vector<2x8xf32> -> vector<2x8xf32>
    %cst_9 = arith.constant 0.000000e+00 : f32
    %8 = vector.broadcast %cst_9 : f32 to vector<2x8xf32>
    %9 = arith.maximumf %7, %8 : vector<2x8xf32>
    %cst_10 = arith.constant dense<0.000000e+00> : vector<2x32xf32>
    %10 = tpu.matmul %9, %6, %cst_10 {dimension_numbers = #tpu.dot_dimension_numbers<[1], [0], [0], [1], [0, 0, 1, 1], [], []>} : vector<2x8xf32>, vector<8x32xf32>, vector<2x32xf32> -> vector<2x32xf32>
    %11 = arith.negf %10 : vector<2x32xf32>
    %12 = math.exp %11 : vector<2x32xf32>
    %cst_11 = arith.constant 1.000000e+00 : f32
    %13 = vector.broadcast %cst_11 : f32 to vector<2x32xf32>
    %14 = arith.addf %13, %12 : vector<2x32xf32>
    %15 = arith.divf %13, %14 : vector<2x32xf32>
    %cst_12 = arith.constant dense<0.000000e+00> : vector<2x8xf32>
    %16 = tpu.matmul %4, %5, %cst_12 {dimension_numbers = #tpu.dot_dimension_numbers<[1], [0], [0], [1], [0, 0, 1, 1], [], []>} : vector<2x32xf32>, vector<32x8xf32>, vector<2x8xf32> -> vector<2x8xf32>
    %cst_13 = arith.constant 0.000000e+00 : f32
    %17 = vector.broadcast %cst_13 : f32 to vector<2x8xf32>
    %18 = arith.maximumf %16, %17 : vector<2x8xf32>
    %cst_14 = arith.constant dense<0.000000e+00> : vector<2x32xf32>
    %19 = tpu.matmul %18, %6, %cst_14 {dimension_numbers = #tpu.dot_dimension_numbers<[1], [0], [0], [1], [0, 0, 1, 1], [], []>} : vector<2x8xf32>, vector<8x32xf32>, vector<2x32xf32> -> vector<2x32xf32>
    %20 = arith.negf %19 : vector<2x32xf32>
    %21 = math.exp %20 : vector<2x32xf32>
    %cst_15 = arith.constant 1.000000e+00 : f32
    %22 = vector.broadcast %cst_15 : f32 to vector<2x32xf32>
    %23 = arith.addf %22, %21 : vector<2x32xf32>
    %24 = arith.divf %22, %23 : vector<2x32xf32>
    %25 = arith.addf %15, %24 : vector<2x32xf32>
    %26 = vector.shape_cast %25 : vector<2x32xf32> to vector<2x32x1xf32>
    %27 = vector.broadcast %26 : vector<2x32x1xf32> to vector<2x32x256xf32>
    %28 = arith.mulf %0, %27 : vector<2x32x256xf32>
    %cst_16 = arith.constant dense<0.000000e+00> : vector<2x256xf32>
    %29 = vector.multi_reduction <add>, %28, %cst_16 [1] : vector<2x32x256xf32> to vector<2x256xf32>
    %cst_17 = arith.constant 3.125000e-02 : f32
    %30 = vector.broadcast %cst_17 : f32 to vector<2x256xf32>
    %31 = arith.mulf %29, %30 : vector<2x256xf32>
    %cst_18 = arith.constant dense<0xFF800000> : vector<2x256xf32>
    %32 = vector.multi_reduction <maximumf>, %28, %cst_18 [1] : vector<2x32x256xf32> to vector<2x256xf32>
    %c0_19 = arith.constant 0 : index
    %c0_20 = arith.constant 0 : index
    %33 = vector.load %arg4[%c0_19, %c0_20] : memref<256x256xf32, #tpu.memory_space<vmem>>, vector<256x256xf32>
    %cst_21 = arith.constant dense<0.000000e+00> : vector<2x256xf32>
    %34 = tpu.matmul %31, %33, %cst_21 {dimension_numbers = #tpu.dot_dimension_numbers<[1], [0], [0], [1], [0, 0, 1, 1], [], []>} : vector<2x256xf32>, vector<256x256xf32>, vector<2x256xf32> -> vector<2x256xf32>
    %c0_22 = arith.constant 0 : index
    %c0_23 = arith.constant 0 : index
    %35 = vector.load %arg5[%c0_22, %c0_23] : memref<256x256xf32, #tpu.memory_space<vmem>>, vector<256x256xf32>
    %cst_24 = arith.constant dense<0.000000e+00> : vector<2x256xf32>
    %36 = tpu.matmul %32, %35, %cst_24 {dimension_numbers = #tpu.dot_dimension_numbers<[1], [0], [0], [1], [0, 0, 1, 1], [], []>} : vector<2x256xf32>, vector<256x256xf32>, vector<2x256xf32> -> vector<2x256xf32>
    %37 = arith.addf %34, %36 : vector<2x256xf32>
    %c0_25 = arith.constant 0 : index
    %38 = memref.load %arg6[%c0_25] : memref<1xf32, #tpu.memory_space<smem>>
    %39 = vector.broadcast %38 : f32 to vector<2x256xf32>
    %40 = arith.addf %37, %39 : vector<2x256xf32>
    %41 = arith.negf %40 : vector<2x256xf32>
    %42 = math.exp %41 : vector<2x256xf32>
    %cst_26 = arith.constant 1.000000e+00 : f32
    %43 = vector.broadcast %cst_26 : f32 to vector<2x256xf32>
    %44 = arith.addf %43, %42 : vector<2x256xf32>
    %45 = arith.divf %43, %44 : vector<2x256xf32>
    %46 = vector.shape_cast %45 : vector<2x256xf32> to vector<2x1x256xf32>
    %47 = vector.broadcast %46 : vector<2x1x256xf32> to vector<2x32x256xf32>
    %48 = arith.mulf %28, %47 : vector<2x32x256xf32>
    %c0_27 = arith.constant 0 : index
    %c0_28 = arith.constant 0 : index
    %c0_29 = arith.constant 0 : index
    %49 = vector.load %arg7[%c0_27, %c0_28, %c0_29] : memref<2x32x256xf32, #tpu.memory_space<vmem>>, vector<2x32x256xf32>
    tpu.vector_store %arg7[%c0_27, %c0_28, %c0_29], %48 {strides = array<i32>} : memref<2x32x256xf32, #tpu.memory_space<vmem>>, vector<2x32x256xf32>,
    %50 = vector.shape_cast %45 : vector<2x256xf32> to vector<2x1x256xf32>
    %c0_30 = arith.constant 0 : index
    %c0_31 = arith.constant 0 : index
    %c0_32 = arith.constant 0 : index
    %51 = vector.load %arg8[%c0_30, %c0_31, %c0_32] : memref<2x1x256xf32, #tpu.memory_space<vmem>>, vector<2x1x256xf32>
    tpu.vector_store %arg8[%c0_30, %c0_31, %c0_32], %50 {strides = array<i32>} : memref<2x1x256xf32, #tpu.memory_space<vmem>>, vector<2x1x256xf32>,
    return
  }
  func.func @transform_0(%arg0: i32) -> (i32, i32, i32) {
    %c0_i32 = arith.constant 0 : i32
    %c0_i32_0 = arith.constant 0 : i32
    %c0_i32_1 = arith.constant 0 : i32
    return %arg0, %c0_i32, %c0_i32_0 : i32, i32, i32
  }
  func.func @transform_1(%arg0: i32) -> (i32, i32) {
    %c0_i32 = arith.constant 0 : i32
    %c0_i32_0 = arith.constant 0 : i32
    %c0_i32_1 = arith.constant 0 : i32
    return %c0_i32, %c0_i32_0 : i32, i32
  }
  func.func @transform_2(%arg0: i32) -> (i32, i32) {
    %c0_i32 = arith.constant 0 : i32
    %c0_i32_0 = arith.constant 0 : i32
    %c0_i32_1 = arith.constant 0 : i32
    return %c0_i32, %c0_i32_0 : i32, i32
  }
  func.func @transform_3(%arg0: i32) -> (i32, i32) {
    %c0_i32 = arith.constant 0 : i32
    %c0_i32_0 = arith.constant 0 : i32
    %c0_i32_1 = arith.constant 0 : i32
    return %c0_i32, %c0_i32_0 : i32, i32
  }
  func.func @transform_4(%arg0: i32) -> (i32, i32) {
    %c0_i32 = arith.constant 0 : i32
    %c0_i32_0 = arith.constant 0 : i32
    %c0_i32_1 = arith.constant 0 : i32
    return %c0_i32, %c0_i32_0 : i32, i32
  }
  func.func @transform_5(%arg0: i32) -> i32 {
    %c0_i32 = arith.constant 0 : i32
    %c0_i32_0 = arith.constant 0 : i32
    return %c0_i32 : i32
  }
  func.func @transform_6(%arg0: i32) -> (i32, i32, i32) {
    %c0_i32 = arith.constant 0 : i32
    %c0_i32_0 = arith.constant 0 : i32
    %c0_i32_1 = arith.constant 0 : i32
    return %arg0, %c0_i32, %c0_i32_0 : i32, i32, i32
  }
  func.func @transform_7(%arg0: i32) -> (i32, i32, i32) {
    %c0_i32 = arith.constant 0 : i32
    %c0_i32_0 = arith.constant 0 : i32
    %c0_i32_1 = arith.constant 0 : i32
    return %arg0, %c0_i32, %c0_i32_0 : i32, i32, i32
  }
}

</mosaic_0001>

<llo_original>
// kernel: cbam_forward.1
$region0: #{cbam_forward.1}
  #allocation0 [shape = 'u32[]', space=smem, size = 0x4, offset = 0x4, fixed_abs, tag = 'smem constant byte address 0x4 - core index']
  #allocation1 [shape = 'u32[144,128]{1,0:T(1,128)}', space=vmem, size = 0x12000, scoped, tag = 'internal scratch']
  #allocation2 [shape = 'f32[1]{0:T(128)S(6)}', space=smem, size = 0x200, scoped, tag = 'scoped memory for cbam_forward.1']
  %s0 = inlined_call_operand.vmem [shape: f32[2,32,256], index: 0, kind: input, shape index: {}]
  %s1 = inlined_call_operand.vmem [shape: f32[32,8], index: 1, kind: input, shape index: {}]
  %s2 = inlined_call_operand.vmem [shape: f32[8,32], index: 2, kind: input, shape index: {}]
  %s3 = inlined_call_operand.vmem [shape: f32[256,256], index: 3, kind: input, shape index: {}]
  %s4 = inlined_call_operand.vmem [shape: f32[256,256], index: 4, kind: input, shape index: {}]
  %s5 = inlined_call_operand.<no memory space> [shape: f32[1], index: 5, kind: input, shape index: {}]
  %s6 = inlined_call_operand.vmem [shape: f32[2,32,256], index: 6, kind: output, shape index: {0}]
  %s7 = inlined_call_operand.vmem [shape: f32[2,1,256], index: 7, kind: output, shape index: {1}]
  %8 = xla_tuple %s6, %s7
  %s9 = sld [smem:[#allocation0]]
  $region42: #{cbam_forward.1} parent=0
    _
  %s11 = ssub.s32 1, %s9
  %s12 = scalar_select 0, %s11, %s9
  %13 = sst [smem:[#allocation2]] %s5
  // Predicated region
  $region2: #{cbam_forward.1} parent=0 // pred_check
    _
  $region3: #{cbam_forward.1} parent=0 // pred_check_branch
    %15 = sbr.rel (0) target = $region5
  $region4: #{cbam_forward.1} parent=0 // pred_region
    _
  $region5: #{cbam_forward.1} parent=0 // pred_fallthru
    _
  // Predicated region
  $region6: #{cbam_forward.1} parent=0 // pred_check
    _
  $region7: #{cbam_forward.1} parent=0 // pred_check_branch
    %17 = sbr.rel (0) target = $region9
  $region8: #{cbam_forward.1} parent=0 // pred_region
    _
  $region9: #{cbam_forward.1} parent=0 // pred_fallthru
    _
  // Predicated region
  $region10: #{cbam_forward.1} parent=0 // pred_check
    _
  $region11: #{cbam_forward.1} parent=0 // pred_check_branch
    %19 = sbr.rel (0) target = $region13
  $region12: #{cbam_forward.1} parent=0 // pred_region
    _
  $region13: #{cbam_forward.1} parent=0 // pred_fallthru
    _
  // Predicated region
  $region14: #{cbam_forward.1} parent=0 // pred_check
    _
  $region15: #{cbam_forward.1} parent=0 // pred_check_branch
    %21 = sbr.rel (0) target = $region17
  $region16: #{cbam_forward.1} parent=0 // pred_region
    _
  $region17: #{cbam_forward.1} parent=0 // pred_fallthru
    _
  // Predicated region
  $region18: #{cbam_forward.1} parent=0 // pred_check
    _
  $region19: #{cbam_forward.1} parent=0 // pred_check_branch
    %23 = sbr.rel (0) target = $region21
  $region20: #{cbam_forward.1} parent=0 // pred_region
    _
  $region21: #{cbam_forward.1} parent=0 // pred_fallthru
    _
  // Predicated region
  $region22: #{cbam_forward.1} parent=0 // pred_check
    _
  $region23: #{cbam_forward.1} parent=0 // pred_check_branch
    %25 = sbr.rel (0) target = $region25
  $region24: #{cbam_forward.1} parent=0 // pred_region
    _
  $region25: #{cbam_forward.1} parent=0 // pred_fallthru
    _
  %v26 = vld [vmem:[%s0] sm:$0xff]
  %v27 = vld [vmem:[%s0 + $0x8] sm:$0xff]
  %v28 = vld [vmem:[%s0 + $0x10] sm:$0xff]
  %v29 = vld [vmem:[%s0 + $0x18] sm:$0xff]
  %v30 = vld [vmem:[%s0 + $0x20] sm:$0xff]
  %v31 = vld [vmem:[%s0 + $0x28] sm:$0xff]
  %v32 = vld [vmem:[%s0 + $0x30] sm:$0xff]
  %v33 = vld [vmem:[%s0 + $0x38] sm:$0xff]
  %v34 = vld [vmem:[%s0 + $0x40] sm:$0xff]
  %v35 = vld [vmem:[%s0 + $0x48] sm:$0xff]
  %v36 = vld [vmem:[%s0 + $0x50] sm:$0xff]
  %v37 = vld [vmem:[%s0 + $0x58] sm:$0xff]
  %v38 = vld [vmem:[%s0 + $0x60] sm:$0xff]
  %v39 = vld [vmem:[%s0 + $0x68] sm:$0xff]
  %v40 = vld [vmem:[%s0 + $0x70] sm:$0xff]
  %v41 = vld [vmem:[%s0 + $0x78] sm:$0xff]
  %v42 = vadd.f32 %v26, %v27
  %43 = vadd.xlane.f32.xlu0 %v42
  %v44 = vpop.xlane.xlu0 %43
  %v45 = vadd.f32 %v28, %v29
  %46 = vadd.xlane.f32.xlu0 %v45
  %v47 = vpop.xlane.xlu0 %46
  %v48 = vadd.f32 %v30, %v31
  %49 = vadd.xlane.f32.xlu0 %v48
  %v50 = vpop.xlane.xlu0 %49
  %v51 = vadd.f32 %v32, %v33
  %52 = vadd.xlane.f32.xlu0 %v51
  %v53 = vpop.xlane.xlu0 %52
  %v54 = vadd.f32 %v34, %v35
  %55 = vadd.xlane.f32.xlu0 %v54
  %v56 = vpop.xlane.xlu0 %55
  %v57 = vadd.f32 %v36, %v37
  %58 = vadd.xlane.f32.xlu0 %v57
  %v59 = vpop.xlane.xlu0 %58
  %v60 = vadd.f32 %v38, %v39
  %61 = vadd.xlane.f32.xlu0 %v60
  %v62 = vpop.xlane.xlu0 %61
  %v63 = vadd.f32 %v40, %v41
  %64 = vadd.xlane.f32.xlu0 %v63
  %v65 = vpop.xlane.xlu0 %64
  %v66 = vmul.f32 %v44, 0.00390625
  %v67 = vmul.f32 %v47, 0.00390625
  %v68 = vmul.f32 %v50, 0.00390625
  %v69 = vmul.f32 %v53, 0.00390625
  %v70 = vmul.f32 %v56, 0.00390625
  %v71 = vmul.f32 %v59, 0.00390625
  %v72 = vmul.f32 %v62, 0.00390625
  %v73 = vmul.f32 %v65, 0.00390625
  %v74 = vmax.f32 %v26, %v27
  %75 = vmax.xlane.f32.xlu0 %v74
  %v76 = vpop.xlane.xlu0 %75
  %v77 = vmax.f32 %v28, %v29
  %78 = vmax.xlane.f32.xlu0 %v77
  %v79 = vpop.xlane.xlu0 %78
  %v80 = vmax.f32 %v30, %v31
  %81 = vmax.xlane.f32.xlu0 %v80
  %v82 = vpop.xlane.xlu0 %81
  %v83 = vmax.f32 %v32, %v33
  %84 = vmax.xlane.f32.xlu0 %v83
  %v85 = vpop.xlane.xlu0 %84
  %v86 = vmax.f32 %v34, %v35
  %87 = vmax.xlane.f32.xlu0 %v86
  %v88 = vpop.xlane.xlu0 %87
  %v89 = vmax.f32 %v36, %v37
  %90 = vmax.xlane.f32.xlu0 %v89
  %v91 = vpop.xlane.xlu0 %90
  %v92 = vmax.f32 %v38, %v39
  %93 = vmax.xlane.f32.xlu0 %v92
  %v94 = vpop.xlane.xlu0 %93
  %v95 = vmax.f32 %v40, %v41
  %96 = vmax.xlane.f32.xlu0 %v95
  %v97 = vpop.xlane.xlu0 %96
  %v98 = vld [vmem:[%s1] sm:$0xff]
  %v99 = vld [vmem:[%s1 + $0x8] sm:$0xff]
  %v100 = vld [vmem:[%s1 + $0x10] sm:$0xff]
  %v101 = vld [vmem:[%s1 + $0x18] sm:$0xff]
  %v102 = vld [vmem:[%s2] sm:$0xff]
  %v111 = vlaneseq
  %v112 = vand.u32 %v111, 127
  %v113 = vlaneseq
  %v114 = vshrl.u32 %v113, 7
  %v115 = vsub.s32 %v112, %v114
  %v116 = vrot.slane %v66, %v115
  %v117 = vadd.s32 %v112, 4294967288
  %v118 = vlaneseq
  %v119 = vshrl.u32 %v118, 7
  %v120 = vsub.s32 %v117, %v119
  %v121 = vrot.slane %v67, %v120
  %vm122 = vcmask 130112
  %v123 = vsel %vm122, %v121, %v116
  %v124 = vadd.s32 %v112, 4294967280
  %v125 = vlaneseq
  %v126 = vshrl.u32 %v125, 7
  %v127 = vsub.s32 %v124, %v126
  %v128 = vrot.slane %v68, %v127
  %vm129 = vcmask 195712
  %v130 = vsel %vm129, %v128, %v123
  %v131 = vadd.s32 %v112, 4294967272
  %v132 = vlaneseq
  %v133 = vshrl.u32 %v132, 7
  %v134 = vsub.s32 %v131, %v133
  %v135 = vrot.slane %v69, %v134
  %vm136 = vcmask 261312
  %v137 = vsel %vm136, %v135, %v130
  %v138 = vlaneseq
  %v139 = vshrl.u32 %v138, 7
  %v140 = vsub.s32 %v112, %v139
  %v141 = vrot.slane %v70, %v140
  %v142 = vlaneseq
  %v143 = vshrl.u32 %v142, 7
  %v144 = vsub.s32 %v117, %v143
  %v145 = vrot.slane %v71, %v144
  %v146 = vsel %vm122, %v145, %v141
  %v147 = vlaneseq
  %v148 = vshrl.u32 %v147, 7
  %v149 = vsub.s32 %v124, %v148
  %v150 = vrot.slane %v72, %v149
  %v151 = vsel %vm129, %v150, %v146
  %v152 = vlaneseq
  %v153 = vshrl.u32 %v152, 7
  %v154 = vsub.s32 %v131, %v153
  %v155 = vrot.slane %v73, %v154
  %v156 = vsel %vm136, %v155, %v151
  %vm157 = vcmask 1041409
  %v158 = vsel %vm157, %v156, %v137
  %vm159 = vcmask 261120
  %v160 = vsel %vm159, %v158, 0
  %162 = vmatprep.subr.mxu0 0.0
  %163 = vmatpush1.msra.mxu0 0.0
  %164 = vmatprep.subr.mxu0 0.0
  %165 = vmatpush1.msra.mxu0 0.0
  %166 = vmatprep.subr.mxu0 0.0
  %167 = vmatpush1.msra.mxu0 0.0
  %168 = vmatprep.subr.mxu0 0.0
  %169 = vmatpush1.msra.mxu0 0.0
  %170 = vmatprep.subr.mxu0 0.0
  %171 = vmatpush1.msra.mxu0 0.0
  %172 = vmatprep.subr.mxu0 0.0
  %173 = vmatpush1.msra.mxu0 0.0
  %174 = vmatprep.subr.mxu0 0.0
  %175 = vmatpush1.msra.mxu0 0.0
  %176 = vmatprep.subr.mxu0 0.0
  %177 = vmatpush1.msra.mxu0 0.0
  %178 = vmatprep.subr.mxu0 0.0
  %179 = vmatpush1.msra.mxu0 0.0
  %180 = vmatprep.subr.mxu0 0.0
  %181 = vmatpush1.msra.mxu0 0.0
  %182 = vmatprep.subr.mxu0 0.0
  %183 = vmatpush1.msra.mxu0 0.0
  %184 = vmatprep.subr.mxu0 0.0
  %185 = vmatpush1.msra.mxu0 0.0
  %186 = vmatprep.subr.mxu0 0.0
  %187 = vmatpush1.msra.mxu0 %v101
  %188 = vmatprep.subr.mxu0 0.0
  %189 = vmatpush1.msra.mxu0 %v100
  %190 = vmatprep.subr.mxu0 0.0
  %191 = vmatpush1.msra.mxu0 %v99
  %192 = vmatprep.subr.mxu0 0.0
  %193 = vmatpush1.msra.mxu0 %v98
  %194 = vmatprep.subr.mxu0 0.0
  %195 = vmatpush2.msra.mxu0 0.0
  %196 = vmatprep.subr.mxu0 0.0
  %197 = vmatpush2.msra.mxu0 0.0
  %198 = vmatprep.subr.mxu0 0.0
  %199 = vmatpush2.msra.mxu0 0.0
  %200 = vmatprep.subr.mxu0 0.0
  %201 = vmatpush2.msra.mxu0 0.0
  %202 = vmatprep.subr.mxu0 0.0
  %203 = vmatpush2.msra.mxu0 0.0
  %204 = vmatprep.subr.mxu0 0.0
  %205 = vmatpush2.msra.mxu0 0.0
  %206 = vmatprep.subr.mxu0 0.0
  %207 = vmatpush2.msra.mxu0 0.0
  %208 = vmatprep.subr.mxu0 0.0
  %209 = vmatpush2.msra.mxu0 0.0
  %210 = vmatprep.subr.mxu0 0.0
  %211 = vmatpush2.msra.mxu0 0.0
  %212 = vmatprep.subr.mxu0 0.0
  %213 = vmatpush2.msra.mxu0 0.0
  %214 = vmatprep.subr.mxu0 0.0
  %215 = vmatpush2.msra.mxu0 0.0
  %216 = vmatprep.subr.mxu0 0.0
  %217 = vmatpush2.msra.mxu0 0.0
  %218 = vmatprep.subr.mxu0 0.0
  %219 = vmatpush2.msra.mxu0 0.0
  %220 = vmatprep.subr.mxu0 0.0
  %221 = vmatpush2.msra.mxu0 0.0
  %222 = vmatprep.subr.mxu0 0.0
  %223 = vmatpush2.msra.mxu0 0.0
  %224 = vmatprep.subr.mxu0 0.0
  %225 = vmatpush2.msra.mxu0 0.0
  %226 = vmatprep.mubr.f32.mxu0 0.0
  %227 = vmatmul.mubr.f32.gmra.mxu0 %v160
  %v228 = vpop.f32.mrf.mxu0
  %v229 = vadd.f32 0.0, %v228
  %v230 = vpop.f32.mrf.mxu0
  %231 = vdwg.mxu0
  %v232 = vmax.f32 %v229, 0.0
  %vm233 = vcmask 64512
  %v235 = vsel %vm233, %v232, 0
  %237 = vmatprep.subr.mxu0 0.0
  %238 = vmatpush1.msra.mxu0 0.0
  %239 = vmatprep.subr.mxu0 0.0
  %240 = vmatpush1.msra.mxu0 0.0
  %241 = vmatprep.subr.mxu0 0.0
  %242 = vmatpush1.msra.mxu0 0.0
  %243 = vmatprep.subr.mxu0 0.0
  %244 = vmatpush1.msra.mxu0 0.0
  %245 = vmatprep.subr.mxu0 0.0
  %246 = vmatpush1.msra.mxu0 0.0
  %247 = vmatprep.subr.mxu0 0.0
  %248 = vmatpush1.msra.mxu0 0.0
  %249 = vmatprep.subr.mxu0 0.0
  %250 = vmatpush1.msra.mxu0 0.0
  %251 = vmatprep.subr.mxu0 0.0
  %252 = vmatpush1.msra.mxu0 0.0
  %253 = vmatprep.subr.mxu0 0.0
  %254 = vmatpush1.msra.mxu0 0.0
  %255 = vmatprep.subr.mxu0 0.0
  %256 = vmatpush1.msra.mxu0 0.0
  %257 = vmatprep.subr.mxu0 0.0
  %258 = vmatpush1.msra.mxu0 0.0
  %259 = vmatprep.subr.mxu0 0.0
  %260 = vmatpush1.msra.mxu0 0.0
  %261 = vmatprep.subr.mxu0 0.0
  %262 = vmatpush1.msra.mxu0 0.0
  %263 = vmatprep.subr.mxu0 0.0
  %264 = vmatpush1.msra.mxu0 0.0
  %265 = vmatprep.subr.mxu0 0.0
  %266 = vmatpush1.msra.mxu0 0.0
  %267 = vmatprep.subr.mxu0 0.0
  %268 = vmatpush1.msra.mxu0 %v102
  %269 = vmatprep.subr.mxu0 0.0
  %270 = vmatpush2.msra.mxu0 0.0
  %271 = vmatprep.subr.mxu0 0.0
  %272 = vmatpush2.msra.mxu0 0.0
  %273 = vmatprep.subr.mxu0 0.0
  %274 = vmatpush2.msra.mxu0 0.0
  %275 = vmatprep.subr.mxu0 0.0
  %276 = vmatpush2.msra.mxu0 0.0
  %277 = vmatprep.subr.mxu0 0.0
  %278 = vmatpush2.msra.mxu0 0.0
  %279 = vmatprep.subr.mxu0 0.0
  %280 = vmatpush2.msra.mxu0 0.0
  %281 = vmatprep.subr.mxu0 0.0
  %282 = vmatpush2.msra.mxu0 0.0
  %283 = vmatprep.subr.mxu0 0.0
  %284 = vmatpush2.msra.mxu0 0.0
  %285 = vmatprep.subr.mxu0 0.0
  %286 = vmatpush2.msra.mxu0 0.0
  %287 = vmatprep.subr.mxu0 0.0
  %288 = vmatpush2.msra.mxu0 0.0
  %289 = vmatprep.subr.mxu0 0.0
  %290 = vmatpush2.msra.mxu0 0.0
  %291 = vmatprep.subr.mxu0 0.0
  %292 = vmatpush2.msra.mxu0 0.0
  %293 = vmatprep.subr.mxu0 0.0
  %294 = vmatpush2.msra.mxu0 0.0
  %295 = vmatprep.subr.mxu0 0.0
  %296 = vmatpush2.msra.mxu0 0.0
  %297 = vmatprep.subr.mxu0 0.0
  %298 = vmatpush2.msra.mxu0 0.0
  %299 = vmatprep.subr.mxu0 0.0
  %300 = vmatpush2.msra.mxu0 0.0
  %301 = vmatprep.mubr.f32.mxu0 0.0
  %302 = vmatmul.mubr.f32.gmra.mxu0 %v235
  %v303 = vpop.f32.mrf.mxu0
  %v304 = vadd.f32 0.0, %v303
  %v305 = vpop.f32.mrf.mxu0
  %306 = vdwg.mxu0
  %v307 = vxor.u32 %v304, 2147483648
  %v308 = vmul.f32 %v307, 1.442695
  %v309 = vpow.pop %v308
  %v310 = vadd.f32 %v309, 1.0
  %v311 = vrcp.pop %v310
  %v312 = vmul.f32 1.0, %v311
  %v321 = vlaneseq
  %v322 = vshrl.u32 %v321, 7
  %v323 = vsub.s32 %v112, %v322
  %v324 = vrot.slane %v76, %v323
  %v325 = vlaneseq
  %v326 = vshrl.u32 %v325, 7
  %v327 = vsub.s32 %v117, %v326
  %v328 = vrot.slane %v79, %v327
  %v329 = vsel %vm122, %v328, %v324
  %v330 = vlaneseq
  %v331 = vshrl.u32 %v330, 7
  %v332 = vsub.s32 %v124, %v331
  %v333 = vrot.slane %v82, %v332
  %v334 = vsel %vm129, %v333, %v329
  %v335 = vlaneseq
  %v336 = vshrl.u32 %v335, 7
  %v337 = vsub.s32 %v131, %v336
  %v338 = vrot.slane %v85, %v337
  %v339 = vsel %vm136, %v338, %v334
  %v340 = vlaneseq
  %v341 = vshrl.u32 %v340, 7
  %v342 = vsub.s32 %v112, %v341
  %v343 = vrot.slane %v88, %v342
  %v344 = vlaneseq
  %v345 = vshrl.u32 %v344, 7
  %v346 = vsub.s32 %v117, %v345
  %v347 = vrot.slane %v91, %v346
  %v348 = vsel %vm122, %v347, %v343
  %v349 = vlaneseq
  %v350 = vshrl.u32 %v349, 7
  %v351 = vsub.s32 %v124, %v350
  %v352 = vrot.slane %v94, %v351
  %v353 = vsel %vm129, %v352, %v348
  %v354 = vlaneseq
  %v355 = vshrl.u32 %v354, 7
  %v356 = vsub.s32 %v131, %v355
  %v357 = vrot.slane %v97, %v356
  %v358 = vsel %vm136, %v357, %v353
  %v359 = vsel %vm157, %v358, %v339
  %v360 = vsel %vm159, %v359, 0
  %362 = vmatprep.subr.mxu0 0.0
  %363 = vmatpush1.msra.mxu0 0.0
  %364 = vmatprep.subr.mxu0 0.0
  %365 = vmatpush1.msra.mxu0 0.0
  %366 = vmatprep.subr.mxu0 0.0
  %367 = vmatpush1.msra.mxu0 0.0
  %368 = vmatprep.subr.mxu0 0.0
  %369 = vmatpush1.msra.mxu0 0.0
  %370 = vmatprep.subr.mxu0 0.0
  %371 = vmatpush1.msra.mxu0 0.0
  %372 = vmatprep.subr.mxu0 0.0
  %373 = vmatpush1.msra.mxu0 0.0
  %374 = vmatprep.subr.mxu0 0.0
  %375 = vmatpush1.msra.mxu0 0.0
  %376 = vmatprep.subr.mxu0 0.0
  %377 = vmatpush1.msra.mxu0 0.0
  %378 = vmatprep.subr.mxu0 0.0
  %379 = vmatpush1.msra.mxu0 0.0
  %380 = vmatprep.subr.mxu0 0.0
  %381 = vmatpush1.msra.mxu0 0.0
  %382 = vmatprep.subr.mxu0 0.0
  %383 = vmatpush1.msra.mxu0 0.0
  %384 = vmatprep.subr.mxu0 0.0
  %385 = vmatpush1.msra.mxu0 0.0
  %386 = vmatprep.subr.mxu0 0.0
  %387 = vmatpush1.msra.mxu0 %v101
  %388 = vmatprep.subr.mxu0 0.0
  %389 = vmatpush1.msra.mxu0 %v100
  %390 = vmatprep.subr.mxu0 0.0
  %391 = vmatpush1.msra.mxu0 %v99
  %392 = vmatprep.subr.mxu0 0.0
  %393 = vmatpush1.msra.mxu0 %v98
  %394 = vmatprep.subr.mxu0 0.0
  %395 = vmatpush2.msra.mxu0 0.0
  %396 = vmatprep.subr.mxu0 0.0
  %397 = vmatpush2.msra.mxu0 0.0
  %398 = vmatprep.subr.mxu0 0.0
  %399 = vmatpush2.msra.mxu0 0.0
  %400 = vmatprep.subr.mxu0 0.0
  %401 = vmatpush2.msra.mxu0 0.0
  %402 = vmatprep.subr.mxu0 0.0
  %403 = vmatpush2.msra.mxu0 0.0
  %404 = vmatprep.subr.mxu0 0.0
  %405 = vmatpush2.msra.mxu0 0.0
  %406 = vmatprep.subr.mxu0 0.0
  %407 = vmatpush2.msra.mxu0 0.0
  %408 = vmatprep.subr.mxu0 0.0
  %409 = vmatpush2.msra.mxu0 0.0
  %410 = vmatprep.subr.mxu0 0.0
  %411 = vmatpush2.msra.mxu0 0.0
  %412 = vmatprep.subr.mxu0 0.0
  %413 = vmatpush2.msra.mxu0 0.0
  %414 = vmatprep.subr.mxu0 0.0
  %415 = vmatpush2.msra.mxu0 0.0
  %416 = vmatprep.subr.mxu0 0.0
  %417 = vmatpush2.msra.mxu0 0.0
  %418 = vmatprep.subr.mxu0 0.0
  %419 = vmatpush2.msra.mxu0 0.0
  %420 = vmatprep.subr.mxu0 0.0
  %421 = vmatpush2.msra.mxu0 0.0
  %422 = vmatprep.subr.mxu0 0.0
  %423 = vmatpush2.msra.mxu0 0.0
  %424 = vmatprep.subr.mxu0 0.0
  %425 = vmatpush2.msra.mxu0 0.0
  %426 = vmatprep.mubr.f32.mxu0 0.0
  %427 = vmatmul.mubr.f32.gmra.mxu0 %v360
  %v428 = vpop.f32.mrf.mxu0
  %v429 = vadd.f32 0.0, %v428
  %v430 = vpop.f32.mrf.mxu0
  %431 = vdwg.mxu0
  %v432 = vmax.f32 %v429, 0.0
  %v434 = vsel %vm233, %v432, 0
  %436 = vmatprep.subr.mxu0 0.0
  %437 = vmatpush1.msra.mxu0 0.0
  %438 = vmatprep.subr.mxu0 0.0
  %439 = vmatpush1.msra.mxu0 0.0
  %440 = vmatprep.subr.mxu0 0.0
  %441 = vmatpush1.msra.mxu0 0.0
  %442 = vmatprep.subr.mxu0 0.0
  %443 = vmatpush1.msra.mxu0 0.0
  %444 = vmatprep.subr.mxu0 0.0
  %445 = vmatpush1.msra.mxu0 0.0
  %446 = vmatprep.subr.mxu0 0.0
  %447 = vmatpush1.msra.mxu0 0.0
  %448 = vmatprep.subr.mxu0 0.0
  %449 = vmatpush1.msra.mxu0 0.0
  %450 = vmatprep.subr.mxu0 0.0
  %451 = vmatpush1.msra.mxu0 0.0
  %452 = vmatprep.subr.mxu0 0.0
  %453 = vmatpush1.msra.mxu0 0.0
  %454 = vmatprep.subr.mxu0 0.0
  %455 = vmatpush1.msra.mxu0 0.0
  %456 = vmatprep.subr.mxu0 0.0
  %457 = vmatpush1.msra.mxu0 0.0
  %458 = vmatprep.subr.mxu0 0.0
  %459 = vmatpush1.msra.mxu0 0.0
  %460 = vmatprep.subr.mxu0 0.0
  %461 = vmatpush1.msra.mxu0 0.0
  %462 = vmatprep.subr.mxu0 0.0
  %463 = vmatpush1.msra.mxu0 0.0
  %464 = vmatprep.subr.mxu0 0.0
  %465 = vmatpush1.msra.mxu0 0.0
  %466 = vmatprep.subr.mxu0 0.0
  %467 = vmatpush1.msra.mxu0 %v102
  %468 = vmatprep.subr.mxu0 0.0
  %469 = vmatpush2.msra.mxu0 0.0
  %470 = vmatprep.subr.mxu0 0.0
  %471 = vmatpush2.msra.mxu0 0.0
  %472 = vmatprep.subr.mxu0 0.0
  %473 = vmatpush2.msra.mxu0 0.0
  %474 = vmatprep.subr.mxu0 0.0
  %475 = vmatpush2.msra.mxu0 0.0
  %476 = vmatprep.subr.mxu0 0.0
  %477 = vmatpush2.msra.mxu0 0.0
  %478 = vmatprep.subr.mxu0 0.0
  %479 = vmatpush2.msra.mxu0 0.0
  %480 = vmatprep.subr.mxu0 0.0
  %481 = vmatpush2.msra.mxu0 0.0
  %482 = vmatprep.subr.mxu0 0.0
  %483 = vmatpush2.msra.mxu0 0.0
  %484 = vmatprep.subr.mxu0 0.0
  %485 = vmatpush2.msra.mxu0 0.0
  %486 = vmatprep.subr.mxu0 0.0
  %487 = vmatpush2.msra.mxu0 0.0
  %488 = vmatprep.subr.mxu0 0.0
  %489 = vmatpush2.msra.mxu0 0.0
  %490 = vmatprep.subr.mxu0 0.0
  %491 = vmatpush2.msra.mxu0 0.0
  %492 = vmatprep.subr.mxu0 0.0
  %493 = vmatpush2.msra.mxu0 0.0
  %494 = vmatprep.subr.mxu0 0.0
  %495 = vmatpush2.msra.mxu0 0.0
  %496 = vmatprep.subr.mxu0 0.0
  %497 = vmatpush2.msra.mxu0 0.0
  %498 = vmatprep.subr.mxu0 0.0
  %499 = vmatpush2.msra.mxu0 0.0
  %500 = vmatprep.mubr.f32.mxu0 0.0
  %501 = vmatmul.mubr.f32.gmra.mxu0 %v434
  %v502 = vpop.f32.mrf.mxu0
  %v503 = vadd.f32 0.0, %v502
  %v504 = vpop.f32.mrf.mxu0
  %505 = vdwg.mxu0
  %v506 = vxor.u32 %v503, 2147483648
  %v507 = vmul.f32 %v506, 1.442695
  %v508 = vpow.pop %v507
  %v509 = vadd.f32 %v508, 1.0
  %v510 = vrcp.pop %v509
  %v511 = vmul.f32 1.0, %v510
  %v512 = vadd.f32 %v312, %v511
  %v513 = vlaneseq
  %v514 = vshrl.u32 %v513, 7
  %v515 = vsub.s32 0, %v514
  %v516 = vrot.slane %v512, %v515
  %518 = vbcast.lane.b32.xlu0 %v516, 256
  %v519 = vpop.permute.xlu0 %518
  %s521 = sor.u32 256, 8
  %522 = vbcast.lane.b32.xlu0 %v516, %s521
  %v523 = vpop.permute.xlu0 %522
  %s525 = sor.u32 256, 16
  %526 = vbcast.lane.b32.xlu0 %v516, %s525
  %v527 = vpop.permute.xlu0 %526
  %s529 = sor.u32 256, 24
  %530 = vbcast.lane.b32.xlu0 %v516, %s529
  %v531 = vpop.permute.xlu0 %530
  %v532 = vlaneseq
  %v533 = vshrl.u32 %v532, 7
  %v534 = vsub.s32 1, %v533
  %v535 = vrot.slane %v512, %v534
  %537 = vbcast.lane.b32.xlu0 %v535, 256
  %v538 = vpop.permute.xlu0 %537
  %s540 = sor.u32 256, 8
  %541 = vbcast.lane.b32.xlu0 %v535, %s540
  %v542 = vpop.permute.xlu0 %541
  %s544 = sor.u32 256, 16
  %545 = vbcast.lane.b32.xlu0 %v535, %s544
  %v546 = vpop.permute.xlu0 %545
  %s548 = sor.u32 256, 24
  %549 = vbcast.lane.b32.xlu0 %v535, %s548
  %v550 = vpop.permute.xlu0 %549
  %v551 = vmul.f32 %v26, %v519
  %v552 = vmul.f32 %v27, %v519
  %v553 = vmul.f32 %v28, %v523
  %v554 = vmul.f32 %v29, %v523
  %v555 = vmul.f32 %v30, %v527
  %v556 = vmul.f32 %v31, %v527
  %v557 = vmul.f32 %v32, %v531
  %v558 = vmul.f32 %v33, %v531
  %v559 = vmul.f32 %v34, %v538
  %v560 = vmul.f32 %v35, %v538
  %v561 = vmul.f32 %v36, %v542
  %v562 = vmul.f32 %v37, %v542
  %v563 = vmul.f32 %v38, %v546
  %v564 = vmul.f32 %v39, %v546
  %v565 = vmul.f32 %v40, %v550
  %v566 = vmul.f32 %v41, %v550
  %v567 = vadd.f32 %v551, %v553
  %v568 = vadd.f32 %v567, %v555
  %v569 = vadd.f32 %v568, %v557
  %v570 = vrot.slane %v569, 4
  %v571 = vadd.f32 %v569, %v570
  %v572 = vrot.slane %v571, 2
  %v573 = vadd.f32 %v571, %v572
  %v574 = vrot.slane %v573, 1
  %v575 = vadd.f32 %v573, %v574
  %v576 = vadd.f32 %v552, %v554
  %v577 = vadd.f32 %v576, %v556
  %v578 = vadd.f32 %v577, %v558
  %v579 = vrot.slane %v578, 4
  %v580 = vadd.f32 %v578, %v579
  %v581 = vrot.slane %v580, 2
  %v582 = vadd.f32 %v580, %v581
  %v583 = vrot.slane %v582, 1
  %v584 = vadd.f32 %v582, %v583
  %v585 = vadd.f32 %v559, %v561
  %v586 = vadd.f32 %v585, %v563
  %v587 = vadd.f32 %v586, %v565
  %v588 = vrot.slane %v587, 4
  %v589 = vadd.f32 %v587, %v588
  %v590 = vrot.slane %v589, 2
  %v591 = vadd.f32 %v589, %v590
  %v592 = vrot.slane %v591, 1
  %v593 = vadd.f32 %v591, %v592
  %v594 = vadd.f32 %v560, %v562
  %v595 = vadd.f32 %v594, %v564
  %v596 = vadd.f32 %v595, %v566
  %v597 = vrot.slane %v596, 4
  %v598 = vadd.f32 %v596, %v597
  %v599 = vrot.slane %v598, 2
  %v600 = vadd.f32 %v598, %v599
  %v601 = vrot.slane %v600, 1
  %v602 = vadd.f32 %v600, %v601
  %v603 = vmul.f32 %v575, 0.03125
  %v604 = vmul.f32 %v584, 0.03125
  %v605 = vmul.f32 %v593, 0.03125
  %v606 = vmul.f32 %v602, 0.03125
  %v607 = vmax.f32 %v551, %v553
  %v608 = vmax.f32 %v607, %v555
  %v609 = vmax.f32 %v608, %v557
  %v610 = vrot.slane %v609, 4
  %v611 = vmax.f32 %v609, %v610
  %v612 = vrot.slane %v611, 2
  %v613 = vmax.f32 %v611, %v612
  %v614 = vrot.slane %v613, 1
  %v615 = vmax.f32 %v613, %v614
  %v616 = vmax.f32 %v552, %v554
  %v617 = vmax.f32 %v616, %v556
  %v618 = vmax.f32 %v617, %v558
  %v619 = vrot.slane %v618, 4
  %v620 = vmax.f32 %v618, %v619
  %v621 = vrot.slane %v620, 2
  %v622 = vmax.f32 %v620, %v621
  %v623 = vrot.slane %v622, 1
  %v624 = vmax.f32 %v622, %v623
  %v625 = vmax.f32 %v559, %v561
  %v626 = vmax.f32 %v625, %v563
  %v627 = vmax.f32 %v626, %v565
  %v628 = vrot.slane %v627, 4
  %v629 = vmax.f32 %v627, %v628
  %v630 = vrot.slane %v629, 2
  %v631 = vmax.f32 %v629, %v630
  %v632 = vrot.slane %v631, 1
  %v633 = vmax.f32 %v631, %v632
  %v634 = vmax.f32 %v560, %v562
  %v635 = vmax.f32 %v634, %v564
  %v636 = vmax.f32 %v635, %v566
  %v637 = vrot.slane %v636, 4
  %v638 = vmax.f32 %v636, %v637
  %v639 = vrot.slane %v638, 2
  %v640 = vmax.f32 %v638, %v639
  %v641 = vrot.slane %v640, 1
  %v642 = vmax.f32 %v640, %v641
  %v643 = vld [vmem:[%s3] sm:$0xff]
  %v644 = vld [vmem:[%s3 + $0x8] sm:$0xff]
  %v645 = vld [vmem:[%s3 + $0x10] sm:$0xff]
  %v646 = vld [vmem:[%s3 + $0x18] sm:$0xff]
  %v647 = vld [vmem:[%s3 + $0x20] sm:$0xff]
  %v648 = vld [vmem:[%s3 + $0x28] sm:$0xff]
  %v649 = vld [vmem:[%s3 + $0x30] sm:$0xff]
  %v650 = vld [vmem:[%s3 + $0x38] sm:$0xff]
  %v651 = vld [vmem:[%s3 + $0x40] sm:$0xff]
  %v652 = vld [vmem:[%s3 + $0x48] sm:$0xff]
  %v653 = vld [vmem:[%s3 + $0x50] sm:$0xff]
  %v654 = vld [vmem:[%s3 + $0x58] sm:$0xff]
  %v655 = vld [vmem:[%s3 + $0x60] sm:$0xff]
  %v656 = vld [vmem:[%s3 + $0x68] sm:$0xff]
  %v657 = vld [vmem:[%s3 + $0x70] sm:$0xff]
  %v658 = vld [vmem:[%s3 + $0x78] sm:$0xff]
  %v659 = vld [vmem:[%s3 + $0x80] sm:$0xff]
  %v660 = vld [vmem:[%s3 + $0x88] sm:$0xff]
  %v661 = vld [vmem:[%s3 + $0x90] sm:$0xff]
  %v662 = vld [vmem:[%s3 + $0x98] sm:$0xff]
  %v663 = vld [vmem:[%s3 + $0xa0] sm:$0xff]
  %v664 = vld [vmem:[%s3 + $0xa8] sm:$0xff]
  %v665 = vld [vmem:[%s3 + $0xb0] sm:$0xff]
  %v666 = vld [vmem:[%s3 + $0xb8] sm:$0xff]
  %v667 = vld [vmem:[%s3 + $0xc0] sm:$0xff]
  %v668 = vld [vmem:[%s3 + $0xc8] sm:$0xff]
  %v669 = vld [vmem:[%s3 + $0xd0] sm:$0xff]
  %v670 = vld [vmem:[%s3 + $0xd8] sm:$0xff]
  %v671 = vld [vmem:[%s3 + $0xe0] sm:$0xff]
  %v672 = vld [vmem:[%s3 + $0xe8] sm:$0xff]
  %v673 = vld [vmem:[%s3 + $0xf0] sm:$0xff]
  %v674 = vld [vmem:[%s3 + $0xf8] sm:$0xff]
  %v675 = vld [vmem:[%s3 + $0x100] sm:$0xff]
  %v676 = vld [vmem:[%s3 + $0x108] sm:$0xff]
  %v677 = vld [vmem:[%s3 + $0x110] sm:$0xff]
  %v678 = vld [vmem:[%s3 + $0x118] sm:$0xff]
  %v679 = vld [vmem:[%s3 + $0x120] sm:$0xff]
  %v680 = vld [vmem:[%s3 + $0x128] sm:$0xff]
  %v681 = vld [vmem:[%s3 + $0x130] sm:$0xff]
  %v682 = vld [vmem:[%s3 + $0x138] sm:$0xff]
  %v683 = vld [vmem:[%s3 + $0x140] sm:$0xff]
  %v684 = vld [vmem:[%s3 + $0x148] sm:$0xff]
  %v685 = vld [vmem:[%s3 + $0x150] sm:$0xff]
  %v686 = vld [vmem:[%s3 + $0x158] sm:$0xff]
  %v687 = vld [vmem:[%s3 + $0x160] sm:$0xff]
  %v688 = vld [vmem:[%s3 + $0x168] sm:$0xff]
  %v689 = vld [vmem:[%s3 + $0x170] sm:$0xff]
  %v690 = vld [vmem:[%s3 + $0x178] sm:$0xff]
  %v691 = vld [vmem:[%s3 + $0x180] sm:$0xff]
  %v692 = vld [vmem:[%s3 + $0x188] sm:$0xff]
  %v693 = vld [vmem:[%s3 + $0x190] sm:$0xff]
  %v694 = vld [vmem:[%s3 + $0x198] sm:$0xff]
  %v695 = vld [vmem:[%s3 + $0x1a0] sm:$0xff]
  %v696 = vld [vmem:[%s3 + $0x1a8] sm:$0xff]
  %v697 = vld [vmem:[%s3 + $0x1b0] sm:$0xff]
  %v698 = vld [vmem:[%s3 + $0x1b8] sm:$0xff]
  %v699 = vld [vmem:[%s3 + $0x1c0] sm:$0xff]
  %v700 = vld [vmem:[%s3 + $0x1c8] sm:$0xff]
  %v701 = vld [vmem:[%s3 + $0x1d0] sm:$0xff]
  %v702 = vld [vmem:[%s3 + $0x1d8] sm:$0xff]
  %v703 = vld [vmem:[%s3 + $0x1e0] sm:$0xff]
  %v704 = vld [vmem:[%s3 + $0x1e8] sm:$0xff]
  %v705 = vld [vmem:[%s3 + $0x1f0] sm:$0xff]
  %v706 = vld [vmem:[%s3 + $0x1f8] sm:$0xff]
  %v707 = vld [vmem:[%s4] sm:$0xff]
  %v708 = vld [vmem:[%s4 + $0x8] sm:$0xff]
  %v709 = vld [vmem:[%s4 + $0x10] sm:$0xff]
  %v710 = vld [vmem:[%s4 + $0x18] sm:$0xff]
  %v711 = vld [vmem:[%s4 + $0x20] sm:$0xff]
  %v712 = vld [vmem:[%s4 + $0x28] sm:$0xff]
  %v713 = vld [vmem:[%s4 + $0x30] sm:$0xff]
  %v714 = vld [vmem:[%s4 + $0x38] sm:$0xff]
  %v715 = vld [vmem:[%s4 + $0x40] sm:$0xff]
  %v716 = vld [vmem:[%s4 + $0x48] sm:$0xff]
  %v717 = vld [vmem:[%s4 + $0x50] sm:$0xff]
  %v718 = vld [vmem:[%s4 + $0x58] sm:$0xff]
  %v719 = vld [vmem:[%s4 + $0x60] sm:$0xff]
  %v720 = vld [vmem:[%s4 + $0x68] sm:$0xff]
  %v721 = vld [vmem:[%s4 + $0x70] sm:$0xff]
  %v722 = vld [vmem:[%s4 + $0x78] sm:$0xff]
  %v723 = vld [vmem:[%s4 + $0x80] sm:$0xff]
  %v724 = vld [vmem:[%s4 + $0x88] sm:$0xff]
  %v725 = vld [vmem:[%s4 + $0x90] sm:$0xff]
  %v726 = vld [vmem:[%s4 + $0x98] sm:$0xff]
  %v727 = vld [vmem:[%s4 + $0xa0] sm:$0xff]
  %v728 = vld [vmem:[%s4 + $0xa8] sm:$0xff]
  %v729 = vld [vmem:[%s4 + $0xb0] sm:$0xff]
  %v730 = vld [vmem:[%s4 + $0xb8] sm:$0xff]
  %v731 = vld [vmem:[%s4 + $0xc0] sm:$0xff]
  %v732 = vld [vmem:[%s4 + $0xc8] sm:$0xff]
  %v733 = vld [vmem:[%s4 + $0xd0] sm:$0xff]
  %v734 = vld [vmem:[%s4 + $0xd8] sm:$0xff]
  %v735 = vld [vmem:[%s4 + $0xe0] sm:$0xff]
  %v736 = vld [vmem:[%s4 + $0xe8] sm:$0xff]
  %v737 = vld [vmem:[%s4 + $0xf0] sm:$0xff]
  %v738 = vld [vmem:[%s4 + $0xf8] sm:$0xff]
  %v739 = vld [vmem:[%s4 + $0x100] sm:$0xff]
  %v740 = vld [vmem:[%s4 + $0x108] sm:$0xff]
  %v741 = vld [vmem:[%s4 + $0x110] sm:$0xff]
  %v742 = vld [vmem:[%s4 + $0x118] sm:$0xff]
  %v743 = vld [vmem:[%s4 + $0x120] sm:$0xff]
  %v744 = vld [vmem:[%s4 + $0x128] sm:$0xff]
  %v745 = vld [vmem:[%s4 + $0x130] sm:$0xff]
  %v746 = vld [vmem:[%s4 + $0x138] sm:$0xff]
  %v747 = vld [vmem:[%s4 + $0x140] sm:$0xff]
  %v748 = vld [vmem:[%s4 + $0x148] sm:$0xff]
  %v749 = vld [vmem:[%s4 + $0x150] sm:$0xff]
  %v750 = vld [vmem:[%s4 + $0x158] sm:$0xff]
  %v751 = vld [vmem:[%s4 + $0x160] sm:$0xff]
  %v752 = vld [vmem:[%s4 + $0x168] sm:$0xff]
  %v753 = vld [vmem:[%s4 + $0x170] sm:$0xff]
  %v754 = vld [vmem:[%s4 + $0x178] sm:$0xff]
  %v755 = vld [vmem:[%s4 + $0x180] sm:$0xff]
  %v756 = vld [vmem:[%s4 + $0x188] sm:$0xff]
  %v757 = vld [vmem:[%s4 + $0x190] sm:$0xff]
  %v758 = vld [vmem:[%s4 + $0x198] sm:$0xff]
  %v759 = vld [vmem:[%s4 + $0x1a0] sm:$0xff]
  %v760 = vld [vmem:[%s4 + $0x1a8] sm:$0xff]
  %v761 = vld [vmem:[%s4 + $0x1b0] sm:$0xff]
  %v762 = vld [vmem:[%s4 + $0x1b8] sm:$0xff]
  %v763 = vld [vmem:[%s4 + $0x1c0] sm:$0xff]
  %v764 = vld [vmem:[%s4 + $0x1c8] sm:$0xff]
  %v765 = vld [vmem:[%s4 + $0x1d0] sm:$0xff]
  %v766 = vld [vmem:[%s4 + $0x1d8] sm:$0xff]
  %v767 = vld [vmem:[%s4 + $0x1e0] sm:$0xff]
  %v768 = vld [vmem:[%s4 + $0x1e8] sm:$0xff]
  %v769 = vld [vmem:[%s4 + $0x1f0] sm:$0xff]
  %v770 = vld [vmem:[%s4 + $0x1f8] sm:$0xff]
  %v775 = vsel %vm157, %v633, %v615
  %v776 = vsel %vm157, %v642, %v624
  %779 = vmatprep.subr.mxu0 %v738
  %780 = vmatpush1.msra.mxu0 %v737
  %781 = vmatprep.subr.mxu0 %v736
  %782 = vmatpush1.msra.mxu0 %v735
  %783 = vmatprep.subr.mxu0 %v734
  %784 = vmatpush1.msra.mxu0 %v733
  %785 = vmatprep.subr.mxu0 %v732
  %786 = vmatpush1.msra.mxu0 %v731
  %787 = vmatprep.subr.mxu0 %v730
  %788 = vmatpush1.msra.mxu0 %v729
  %789 = vmatprep.subr.mxu0 %v728
  %790 = vmatpush1.msra.mxu0 %v727
  %791 = vmatprep.subr.mxu0 %v726
  %792 = vmatpush1.msra.mxu0 %v725
  %793 = vmatprep.subr.mxu0 %v724
  %794 = vmatpush1.msra.mxu0 %v723
  %795 = vmatprep.subr.mxu0 %v722
  %796 = vmatpush1.msra.mxu0 %v721
  %797 = vmatprep.subr.mxu0 %v720
  %798 = vmatpush1.msra.mxu0 %v719
  %799 = vmatprep.subr.mxu0 %v718
  %800 = vmatpush1.msra.mxu0 %v717
  %801 = vmatprep.subr.mxu0 %v716
  %802 = vmatpush1.msra.mxu0 %v715
  %803 = vmatprep.subr.mxu0 %v714
  %804 = vmatpush1.msra.mxu0 %v713
  %805 = vmatprep.subr.mxu0 %v712
  %806 = vmatpush1.msra.mxu0 %v711
  %807 = vmatprep.subr.mxu0 %v710
  %808 = vmatpush1.msra.mxu0 %v709
  %809 = vmatprep.subr.mxu0 %v708
  %810 = vmatpush1.msra.mxu0 %v707
  %811 = vmatprep.subr.mxu0 %v770
  %812 = vmatpush2.msra.mxu0 %v769
  %813 = vmatprep.subr.mxu0 %v768
  %814 = vmatpush2.msra.mxu0 %v767
  %815 = vmatprep.subr.mxu0 %v766
  %816 = vmatpush2.msra.mxu0 %v765
  %817 = vmatprep.subr.mxu0 %v764
  %818 = vmatpush2.msra.mxu0 %v763
  %819 = vmatprep.subr.mxu0 %v762
  %820 = vmatpush2.msra.mxu0 %v761
  %821 = vmatprep.subr.mxu0 %v760
  %822 = vmatpush2.msra.mxu0 %v759
  %823 = vmatprep.subr.mxu0 %v758
  %824 = vmatpush2.msra.mxu0 %v757
  %825 = vmatprep.subr.mxu0 %v756
  %826 = vmatpush2.msra.mxu0 %v755
  %827 = vmatprep.subr.mxu0 %v754
  %828 = vmatpush2.msra.mxu0 %v753
  %829 = vmatprep.subr.mxu0 %v752
  %830 = vmatpush2.msra.mxu0 %v751
  %831 = vmatprep.subr.mxu0 %v750
  %832 = vmatpush2.msra.mxu0 %v749
  %833 = vmatprep.subr.mxu0 %v748
  %834 = vmatpush2.msra.mxu0 %v747
  %835 = vmatprep.subr.mxu0 %v746
  %836 = vmatpush2.msra.mxu0 %v745
  %837 = vmatprep.subr.mxu0 %v744
  %838 = vmatpush2.msra.mxu0 %v743
  %839 = vmatprep.subr.mxu0 %v742
  %840 = vmatpush2.msra.mxu0 %v741
  %841 = vmatprep.subr.mxu0 %v740
  %842 = vmatpush2.msra.mxu0 %v739
  %843 = vmatprep.mubr.f32.mxu0 %v776
  %844 = vmatmul.mubr.f32.gmra.mxu0 %v775
  %v845 = vpop.f32.mrf.mxu0
  %v846 = vadd.f32 0.0, %v845
  %v847 = vpop.f32.mrf.mxu0
  %v848 = vadd.f32 0.0, %v847
  %849 = vdwg.mxu0
  %v854 = vsel %vm157, %v605, %v603
  %v855 = vsel %vm157, %v606, %v604
  %858 = vmatprep.subr.mxu0 %v674
  %859 = vmatpush1.msra.mxu0 %v673
  %860 = vmatprep.subr.mxu0 %v672
  %861 = vmatpush1.msra.mxu0 %v671
  %862 = vmatprep.subr.mxu0 %v670
  %863 = vmatpush1.msra.mxu0 %v669
  %864 = vmatprep.subr.mxu0 %v668
  %865 = vmatpush1.msra.mxu0 %v667
  %866 = vmatprep.subr.mxu0 %v666
  %867 = vmatpush1.msra.mxu0 %v665
  %868 = vmatprep.subr.mxu0 %v664
  %869 = vmatpush1.msra.mxu0 %v663
  %870 = vmatprep.subr.mxu0 %v662
  %871 = vmatpush1.msra.mxu0 %v661
  %872 = vmatprep.subr.mxu0 %v660
  %873 = vmatpush1.msra.mxu0 %v659
  %874 = vmatprep.subr.mxu0 %v658
  %875 = vmatpush1.msra.mxu0 %v657
  %876 = vmatprep.subr.mxu0 %v656
  %877 = vmatpush1.msra.mxu0 %v655
  %878 = vmatprep.subr.mxu0 %v654
  %879 = vmatpush1.msra.mxu0 %v653
  %880 = vmatprep.subr.mxu0 %v652
  %881 = vmatpush1.msra.mxu0 %v651
  %882 = vmatprep.subr.mxu0 %v650
  %883 = vmatpush1.msra.mxu0 %v649
  %884 = vmatprep.subr.mxu0 %v648
  %885 = vmatpush1.msra.mxu0 %v647
  %886 = vmatprep.subr.mxu0 %v646
  %887 = vmatpush1.msra.mxu0 %v645
  %888 = vmatprep.subr.mxu0 %v644
  %889 = vmatpush1.msra.mxu0 %v643
  %890 = vmatprep.subr.mxu0 %v706
  %891 = vmatpush2.msra.mxu0 %v705
  %892 = vmatprep.subr.mxu0 %v704
  %893 = vmatpush2.msra.mxu0 %v703
  %894 = vmatprep.subr.mxu0 %v702
  %895 = vmatpush2.msra.mxu0 %v701
  %896 = vmatprep.subr.mxu0 %v700
  %897 = vmatpush2.msra.mxu0 %v699
  %898 = vmatprep.subr.mxu0 %v698
  %899 = vmatpush2.msra.mxu0 %v697
  %900 = vmatprep.subr.mxu0 %v696
  %901 = vmatpush2.msra.mxu0 %v695
  %902 = vmatprep.subr.mxu0 %v694
  %903 = vmatpush2.msra.mxu0 %v693
  %904 = vmatprep.subr.mxu0 %v692
  %905 = vmatpush2.msra.mxu0 %v691
  %906 = vmatprep.subr.mxu0 %v690
  %907 = vmatpush2.msra.mxu0 %v689
  %908 = vmatprep.subr.mxu0 %v688
  %909 = vmatpush2.msra.mxu0 %v687
  %910 = vmatprep.subr.mxu0 %v686
  %911 = vmatpush2.msra.mxu0 %v685
  %912 = vmatprep.subr.mxu0 %v684
  %913 = vmatpush2.msra.mxu0 %v683
  %914 = vmatprep.subr.mxu0 %v682
  %915 = vmatpush2.msra.mxu0 %v681
  %916 = vmatprep.subr.mxu0 %v680
  %917 = vmatpush2.msra.mxu0 %v679
  %918 = vmatprep.subr.mxu0 %v678
  %919 = vmatpush2.msra.mxu0 %v677
  %920 = vmatprep.subr.mxu0 %v676
  %921 = vmatpush2.msra.mxu0 %v675
  %922 = vmatprep.mubr.f32.mxu0 %v855
  %923 = vmatmul.mubr.f32.gmra.mxu0 %v854
  %v924 = vpop.f32.mrf.mxu0
  %v925 = vadd.f32 %v846, %v924
  %v926 = vpop.f32.mrf.mxu0
  %v927 = vadd.f32 %v848, %v926
  %928 = vdwg.mxu0
  %s929 = sld [smem:[#allocation2]]
  %v930 = vstv %s929
  %v931 = vadd.f32 %v925, %v930
  %v932 = vadd.f32 %v927, %v930
  %v933 = vxor.u32 %v931, 2147483648
  %v934 = vxor.u32 %v932, 2147483648
  %v935 = vmul.f32 %v933, 1.442695
  %v936 = vpow.pop %v935
  %v937 = vmul.f32 %v934, 1.442695
  %v938 = vpow.pop %v937
  %v939 = vadd.f32 %v936, 1.0
  %v940 = vadd.f32 %v938, 1.0
  %v941 = vrcp.pop %v939
  %v942 = vmul.f32 1.0, %v941
  %v943 = vrcp.pop %v940
  %v944 = vmul.f32 1.0, %v943
  %v947 = vcombine.low %v942, %v944
  %v949 = vunpack.c.l.s4 1966171168
  %v950 = vunpack.c.0.s8 %v949
  %v951 = vlaneseq
  %v952 = vshrl.u32 %v951, 7
  %v953 = vsub.s32 %v950, %v952
  %v954 = vrot.slane %v947, %v953
  %v955 = vcombine.high %v954, %v954
  %v957 = vunpack.c.l.s4 1966171168
  %v958 = vunpack.c.0.s8 %v957
  %v959 = vlaneseq
  %v960 = vshrl.u32 %v959, 7
  %v961 = vsub.s32 %v958, %v960
  %v962 = vrot.slane %v954, %v961
  %v964 = vunpack.c.l.s4 1966171168
  %v965 = vunpack.c.0.s8 %v964
  %v966 = vlaneseq
  %v967 = vshrl.u32 %v966, 7
  %v968 = vsub.s32 %v965, %v967
  %v969 = vrot.slane %v955, %v968
  %v972 = vlaneseq
  %v973 = vshrl.u32 %v972, 7
  %v974 = vsub.s32 0, %v973
  %v975 = vrot.slane %v962, %v974
  %v976 = vlaneseq
  %v977 = vshrl.u32 %v976, 7
  %v978 = vsub.s32 1, %v977
  %v979 = vrot.slane %v962, %v978
  %v980 = vlaneseq
  %v981 = vshrl.u32 %v980, 7
  %v982 = vsub.s32 0, %v981
  %v983 = vrot.slane %v969, %v982
  %v984 = vlaneseq
  %v985 = vshrl.u32 %v984, 7
  %v986 = vsub.s32 1, %v985
  %v987 = vrot.slane %v969, %v986
  %v992 = vmul.f32 %v551, %v975
  %v993 = vmul.f32 %v552, %v979
  %v994 = vmul.f32 %v553, %v975
  %v995 = vmul.f32 %v554, %v979
  %v996 = vmul.f32 %v555, %v975
  %v997 = vmul.f32 %v556, %v979
  %v998 = vmul.f32 %v557, %v975
  %v999 = vmul.f32 %v558, %v979
  %v1000 = vmul.f32 %v559, %v983
  %v1001 = vmul.f32 %v560, %v987
  %v1002 = vmul.f32 %v561, %v983
  %v1003 = vmul.f32 %v562, %v987
  %v1004 = vmul.f32 %v563, %v983
  %v1005 = vmul.f32 %v564, %v987
  %v1006 = vmul.f32 %v565, %v983
  %v1007 = vmul.f32 %v566, %v987
  %1008 = vst [vmem:[%s6] sm:$0xff] %v992
  %1009 = vst [vmem:[%s6 + $0x8] sm:$0xff] %v993
  %1010 = vst [vmem:[%s6 + $0x10] sm:$0xff] %v994
  %1011 = vst [vmem:[%s6 + $0x18] sm:$0xff] %v995
  %1012 = vst [vmem:[%s6 + $0x20] sm:$0xff] %v996
  %1013 = vst [vmem:[%s6 + $0x28] sm:$0xff] %v997
  %1014 = vst [vmem:[%s6 + $0x30] sm:$0xff] %v998
  %1015 = vst [vmem:[%s6 + $0x38] sm:$0xff] %v999
  %1016 = vst [vmem:[%s6 + $0x40] sm:$0xff] %v1000
  %1017 = vst [vmem:[%s6 + $0x48] sm:$0xff] %v1001
  %1018 = vst [vmem:[%s6 + $0x50] sm:$0xff] %v1002
  %1019 = vst [vmem:[%s6 + $0x58] sm:$0xff] %v1003
  %1020 = vst [vmem:[%s6 + $0x60] sm:$0xff] %v1004
  %1021 = vst [vmem:[%s6 + $0x68] sm:$0xff] %v1005
  %1022 = vst [vmem:[%s6 + $0x70] sm:$0xff] %v1006
  %1023 = vst [vmem:[%s6 + $0x78] sm:$0xff] %v1007
  %v1024 = vlaneseq
  %vm1025 = vcmp.ge.s32.totalorder %v1024, 0
  %vm1026 = vcmp.lt.s32.totalorder %v1024, 256
  %vm1027 = vmand %vm1025, %vm1026
  %1028 = vst.msk [vmem:[%s7] sm:$0x3] %vm1027, %v962
  %1029 = vst.msk [vmem:[%s7 + $0x2] sm:$0x3] %vm1027, %v969
  // Predicated region
  $region26: #{cbam_forward.1} parent=0 // pred_check
    _
  $region27: #{cbam_forward.1} parent=0 // pred_check_branch
    %1031 = sbr.rel (0) target = $region29
  $region28: #{cbam_forward.1} parent=0 // pred_region
    _
  $region29: #{cbam_forward.1} parent=0 // pred_fallthru
    _
  // Predicated region
  $region30: #{cbam_forward.1} parent=0 // pred_check
    _
  $region31: #{cbam_forward.1} parent=0 // pred_check_branch
    %1033 = sbr.rel (0) target = $region33
  $region32: #{cbam_forward.1} parent=0 // pred_region
    _
  $region33: #{cbam_forward.1} parent=0 // pred_fallthru
    _
  // Predicated region
  $region34: #{cbam_forward.1} parent=0 // pred_check
    _
  $region35: #{cbam_forward.1} parent=0 // pred_check_branch
    %1035 = sbr.rel (0) target = $region37
  $region36: #{cbam_forward.1} parent=0 // pred_region
    _
  $region37: #{cbam_forward.1} parent=0 // pred_fallthru
    _
  // Predicated region
  $region38: #{cbam_forward.1} parent=0 // pred_check
    _
  $region39: #{cbam_forward.1} parent=0 // pred_check_branch
    %1037 = sbr.rel (0) target = $region41
  $region40: #{cbam_forward.1} parent=0 // pred_region
    _
  $region41: #{cbam_forward.1} parent=0 // pred_fallthru
    _

</llo_original>
